<compile_context>
chip_gen: v5e
topology: v5e:2x2
jax: 0.10.0
libtpu: 0.0.40
codegen_flags: <defaults>
</compile_context>

<pallas_src>
import jax
import jax.numpy as jnp
from jax import lax
from jax.experimental import pallas as pl
from jax.experimental.pallas import tpu as pltpu


def _round_up(v, m):
    return ((v + m - 1) // m) * m


def _softplus(o):
    # Numerically stable softplus: max(o, 0) + log1p(exp(-|o|)).
    return jnp.maximum(o, 0.0) + jnp.log1p(jnp.exp(-jnp.abs(o)))


def _stable_mixture_kernel(c_ref, x_ref, w1_ref, b1_ref, w2_ref, b2_ref,
                           mean_ref, var_ref, shape_ref, rate_ref, mix_ref):
    # c_ref:  SMEM (2,)   = [shape_constant, rate_constant]
    # x_ref:  (TB, F)     native (B, F) layout -> one contiguous DMA per grid step
    # w1_ref: (H, F)  b1_ref: (H, 1)   w2_ref: (O, H)  b2_ref: (O, 1)
    # out refs: (1, TB) each, lane-dense unmasked stores (masked only on ragged tail)
    x = x_ref[...]

    # layer_1 + ReLU (dropout is identity in eval mode). Contract both F axes so the
    # result stays batch-on-lanes: (H, F) x (TB, F) -> (H, TB).
    h = lax.dot_general(w1_ref[...], x, (((1,), (1,)), ((), ())),
                        preferred_element_type=jnp.float32) + b1_ref[...]
    h = jnp.maximum(h, 0.0)

    # layer_2_1 -> (O, TB)
    o = jnp.dot(w2_ref[...], h, preferred_element_type=jnp.float32) + b2_ref[...]

    shape_c = c_ref[0]
    rate_c = c_ref[1]

    mean_ref[...] = o[0:1, :]
    var_ref[...] = _softplus(o[1:2, :])
    shape_ref[...] = _softplus(o[2:3, :]) * shape_c
    rate_ref[...] = _softplus(o[3:4, :]) * rate_c
    mix_ref[...] = 1.0 / (1.0 + jnp.exp(-o[4:5, :]))


def stable_mixture_forward(x, w1, b1, w2, b2, shape_constant, rate_constant,
                           *, batch_tile=16384):
    """StableMixtureModel forward (eval mode).

    x:  (B, F) float32
    w1: (H, F), b1: (H,)   -- PyTorch nn.Linear layout (out_features, in_features)
    w2: (O, H), b2: (O,)   -- O = 5
    Returns (mean, var, shape, rate, mixture_var), each (B,) float32.
    """
    B, F = x.shape
    H = w1.shape[0]
    O = w2.shape[0]

    # Batch tile: as large as possible to amortise the ~0.35 us per-grid-step
    # overhead, capped so the double-buffered x tile stays comfortably inside the
    # 32 MiB scoped-VMEM default (v7x has only 64 MiB physical). For very large B,
    # prefer >= 2 tiles so v7x's two TensorCores both get work.
    tb = _round_up(min(batch_tile, _round_up(B, 128)), 128)
    max_x_tile_bytes = 8 << 20  # per x buffer; x is double-buffered by BlockSpec
    tb = min(tb, max(128, ((max_x_tile_bytes // (4 * F)) // 128) * 128))
    n_tiles = pl.cdiv(B, tb)  # ragged last block: reads padded, writes masked

    xf = x.astype(jnp.float32)
    w1f = w1.astype(jnp.float32)
    w2f = w2.astype(jnp.float32)
    b1_col = b1.reshape(H, 1).astype(jnp.float32)
    b2_col = b2.reshape(O, 1).astype(jnp.float32)
    consts = jnp.stack([jnp.asarray(shape_constant, jnp.float32),
                        jnp.asarray(rate_constant, jnp.float32)])  # (2,) in SMEM

    head_shape = jax.ShapeDtypeStruct((1, B), jnp.float32)
    head_spec = pl.BlockSpec((1, tb), lambda i: (0, i))

    cost = pl.CostEstimate(
        flops=2 * B * (F * H + H * O),
        transcendentals=4 * B,
        bytes_accessed=4 * (B * F + H * F + H + O * H + O + 5 * B),
    )

    outs = pl.pallas_call(
        _stable_mixture_kernel,
        out_shape=(head_shape,) * 5,
        grid=(n_tiles,),
        in_specs=[
            pl.BlockSpec(memory_space=pltpu.MemorySpace.SMEM),  # 2 learned scalars
            pl.BlockSpec((tb, F), lambda i: (i, 0)),            # x streams (double-buffered)
            pl.BlockSpec((H, F), lambda i: (0, 0)),             # weights stay VMEM-resident
            pl.BlockSpec((H, 1), lambda i: (0, 0)),
            pl.BlockSpec((O, H), lambda i: (0, 0)),
            pl.BlockSpec((O, 1), lambda i: (0, 0)),
        ],
        out_specs=(head_spec,) * 5,
        compiler_params=pltpu.CompilerParams(
            # Shards the batch grid across v7x's 2 TensorCores; harmless on v5e/v6e.
            dimension_semantics=("parallel",),
        ),
        cost_estimate=cost,
    )(consts, xf, w1f, b1_col, w2f, b2_col)

    mean, var, shape, rate, mixture_var = (o.reshape(B) for o in outs)
    return mean, var, shape, rate, mixture_var


def _reference_forward(x, w1, b1, w2, b2, shape_constant, rate_constant):
    h = jnp.maximum(x @ w1.T + b1, 0.0)
    o = h @ w2.T + b2
    mean = o[:, 0]
    var = jax.nn.softplus(o[:, 1])
    shape = jax.nn.softplus(o[:, 2]) * shape_constant
    rate = jax.nn.softplus(o[:, 3]) * rate_constant
    mixture_var = jax.nn.sigmoid(o[:, 4])
    return mean, var, shape, rate, mixture_var


if __name__ == "__main__":
    key = jax.random.PRNGKey(0)
    k_x, k_w1, k_b1, k_w2, k_b2 = jax.random.split(key, 5)

    batch = 8
    n_features = 32
    hidden = 50
    n_out = 5

    # Deterministic synthetic parameters (PyTorch Linear init-like scale),
    # stored in PyTorch (out_features, in_features) layout.
    x = jax.random.normal(k_x, (batch, n_features), dtype=jnp.float32)
    bound1 = 1.0 / float(n_features) ** 0.5
    w1 = jax.random.uniform(k_w1, (hidden, n_features), jnp.float32, -bound1, bound1)
    b1 = jax.random.uniform(k_b1, (hidden,), jnp.float32, -bound1, bound1)
    bound2 = 1.0 / float(hidden) ** 0.5
    w2 = jax.random.uniform(k_w2, (n_out, hidden), jnp.float32, -bound2, bound2)
    b2 = jax.random.uniform(k_b2, (n_out,), jnp.float32, -bound2, bound2)
    shape_constant = jnp.asarray(1.0, dtype=jnp.float32)
    rate_constant = jnp.asarray(1.0, dtype=jnp.float32)

    outs = stable_mixture_forward(
        x, w1, b1, w2, b2, shape_constant, rate_constant)
    jax.block_until_ready(outs)

    # Sanity check against a pure-JAX reference.
    refs = _reference_forward(x, w1, b1, w2, b2, shape_constant, rate_constant)
    for got, want in zip(outs, refs):
        assert got.shape == (batch,)
        assert jnp.allclose(got, want, atol=1e-5, rtol=1e-5)

    print("KERNEL_OK")
</pallas_src>

<mosaic_0001>
module attributes {stable_mosaic.version = 11 : i64} {
  func.func @_stable_mixture_kernel(%arg0: i32, %arg1: memref<2xf32, #tpu.memory_space<smem>>, %arg2: memref<128x32xf32, #tpu.memory_space<vmem>>, %arg3: memref<50x32xf32, #tpu.memory_space<vmem>>, %arg4: memref<50x1xf32, #tpu.memory_space<vmem>>, %arg5: memref<5x50xf32, #tpu.memory_space<vmem>>, %arg6: memref<5x1xf32, #tpu.memory_space<vmem>>, %arg7: memref<1x128xf32, #tpu.memory_space<vmem>>, %arg8: memref<1x128xf32, #tpu.memory_space<vmem>>, %arg9: memref<1x128xf32, #tpu.memory_space<vmem>>, %arg10: memref<1x128xf32, #tpu.memory_space<vmem>>, %arg11: memref<1x128xf32, #tpu.memory_space<vmem>>) attributes {dimension_semantics = [#tpu.dimension_semantics<parallel>], iteration_bounds = array<i64: 1>, scalar_prefetch = 0 : i64, scratch_operands = 0 : i64, tpu.core_type = #tpu.core_type<tc>, window_params = [{transform_indices = @transform_0, window_bounds = array<i64: 2>}, {transform_indices = @transform_1, window_bounds = array<i64: 128, 32>}, {pipeline_mode = #tpu.pipeline_mode<synchronous>, transform_indices = @transform_2, window_bounds = array<i64: 50, 32>}, {pipeline_mode = #tpu.pipeline_mode<synchronous>, transform_indices = @transform_3, window_bounds = array<i64: 50, 1>}, {pipeline_mode = #tpu.pipeline_mode<synchronous>, transform_indices = @transform_4, window_bounds = array<i64: 5, 50>}, {pipeline_mode = #tpu.pipeline_mode<synchronous>, transform_indices = @transform_5, window_bounds = array<i64: 5, 1>}, {transform_indices = @transform_6, window_bounds = array<i64: 1, 128>}, {transform_indices = @transform_7, window_bounds = array<i64: 1, 128>}, {transform_indices = @transform_8, window_bounds = array<i64: 1, 128>}, {transform_indices = @transform_9, window_bounds = array<i64: 1, 128>}, {transform_indices = @transform_10, window_bounds = array<i64: 1, 128>}]} {
    %c0 = arith.constant 0 : index
    %c0_0 = arith.constant 0 : index
    %0 = vector.load %arg2[%c0, %c0_0] : memref<128x32xf32, #tpu.memory_space<vmem>>, vector<128x32xf32>
    %c0_1 = arith.constant 0 : index
    %c0_2 = arith.constant 0 : index
    %1 = vector.load %arg3[%c0_1, %c0_2] : memref<50x32xf32, #tpu.memory_space<vmem>>, vector<50x32xf32>
    %cst = arith.constant dense<0.000000e+00> : vector<50x128xf32>
    %2 = tpu.matmul %1, %0, %cst {dimension_numbers = #tpu.dot_dimension_numbers<[1], [1], [0], [0], [0, 0, 1, 0], [], []>} : vector<50x32xf32>, vector<128x32xf32>, vector<50x128xf32> -> vector<50x128xf32>
    %c0_3 = arith.constant 0 : index
    %c0_4 = arith.constant 0 : index
    %3 = vector.load %arg4[%c0_3, %c0_4] : memref<50x1xf32, #tpu.memory_space<vmem>>, vector<50x1xf32>
    %4 = vector.broadcast %3 : vector<50x1xf32> to vector<50x128xf32>
    %5 = arith.addf %2, %4 : vector<50x128xf32>
    %cst_5 = arith.constant 0.000000e+00 : f32
    %6 = vector.broadcast %cst_5 : f32 to vector<50x128xf32>
    %7 = arith.maximumf %5, %6 : vector<50x128xf32>
    %c0_6 = arith.constant 0 : index
    %c0_7 = arith.constant 0 : index
    %8 = vector.load %arg5[%c0_6, %c0_7] : memref<5x50xf32, #tpu.memory_space<vmem>>, vector<5x50xf32>
    %cst_8 = arith.constant dense<0.000000e+00> : vector<5x128xf32>
    %9 = tpu.matmul %8, %7, %cst_8 {dimension_numbers = #tpu.dot_dimension_numbers<[1], [0], [0], [1], [0, 0, 1, 1], [], []>} : vector<5x50xf32>, vector<50x128xf32>, vector<5x128xf32> -> vector<5x128xf32>
    %c0_9 = arith.constant 0 : index
    %c0_10 = arith.constant 0 : index
    %10 = vector.load %arg6[%c0_9, %c0_10] : memref<5x1xf32, #tpu.memory_space<vmem>>, vector<5x1xf32>
    %11 = vector.broadcast %10 : vector<5x1xf32> to vector<5x128xf32>
    %12 = arith.addf %9, %11 : vector<5x128xf32>
    %c0_11 = arith.constant 0 : index
    %13 = memref.load %arg1[%c0_11] : memref<2xf32, #tpu.memory_space<smem>>
    %c1 = arith.constant 1 : index
    %14 = memref.load %arg1[%c1] : memref<2xf32, #tpu.memory_space<smem>>
    %15 = vector.extract_strided_slice %12 {offsets = [0, 0], sizes = [1, 128], strides = [1, 1]} : vector<5x128xf32> to vector<1x128xf32>
    %c0_12 = arith.constant 0 : index
    %c0_13 = arith.constant 0 : index
    %16 = vector.load %arg7[%c0_12, %c0_13] : memref<1x128xf32, #tpu.memory_space<vmem>>, vector<1x128xf32>
    tpu.vector_store %arg7[%c0_12, %c0_13], %15 {strides = array<i32>} : memref<1x128xf32, #tpu.memory_space<vmem>>, vector<1x128xf32>,
    %17 = vector.extract_strided_slice %12 {offsets = [1, 0], sizes = [1, 128], strides = [1, 1]} : vector<5x128xf32> to vector<1x128xf32>
    %cst_14 = arith.constant 0.000000e+00 : f32
    %18 = vector.broadcast %cst_14 : f32 to vector<1x128xf32>
    %19 = arith.maximumf %17, %18 : vector<1x128xf32>
    %20 = math.absf %17 : vector<1x128xf32>
    %cst_15 = arith.constant 0.000000e+00 : f32
    %21 = vector.broadcast %cst_15 : f32 to vector<1x128xf32>
    %22 = arith.subf %21, %20 : vector<1x128xf32>
    %23 = math.exp %22 : vector<1x128xf32>
    %24 = math.log1p %23 : vector<1x128xf32>
    %25 = arith.addf %19, %24 : vector<1x128xf32>
    %c0_16 = arith.constant 0 : index
    %c0_17 = arith.constant 0 : index
    %26 = vector.load %arg8[%c0_16, %c0_17] : memref<1x128xf32, #tpu.memory_space<vmem>>, vector<1x128xf32>
    tpu.vector_store %arg8[%c0_16, %c0_17], %25 {strides = array<i32>} : memref<1x128xf32, #tpu.memory_space<vmem>>, vector<1x128xf32>,
    %27 = vector.extract_strided_slice %12 {offsets = [2, 0], sizes = [1, 128], strides = [1, 1]} : vector<5x128xf32> to vector<1x128xf32>
    %cst_18 = arith.constant 0.000000e+00 : f32
    %28 = vector.broadcast %cst_18 : f32 to vector<1x128xf32>
    %29 = arith.maximumf %27, %28 : vector<1x128xf32>
    %30 = math.absf %27 : vector<1x128xf32>
    %cst_19 = arith.constant 0.000000e+00 : f32
    %31 = vector.broadcast %cst_19 : f32 to vector<1x128xf32>
    %32 = arith.subf %31, %30 : vector<1x128xf32>
    %33 = math.exp %32 : vector<1x128xf32>
    %34 = math.log1p %33 : vector<1x128xf32>
    %35 = arith.addf %29, %34 : vector<1x128xf32>
    %36 = vector.broadcast %13 : f32 to vector<1x128xf32>
    %37 = arith.mulf %35, %36 : vector<1x128xf32>
    %c0_20 = arith.constant 0 : index
    %c0_21 = arith.constant 0 : index
    %38 = vector.load %arg9[%c0_20, %c0_21] : memref<1x128xf32, #tpu.memory_space<vmem>>, vector<1x128xf32>
    tpu.vector_store %arg9[%c0_20, %c0_21], %37 {strides = array<i32>} : memref<1x128xf32, #tpu.memory_space<vmem>>, vector<1x128xf32>,
    %39 = vector.extract_strided_slice %12 {offsets = [3, 0], sizes = [1, 128], strides = [1, 1]} : vector<5x128xf32> to vector<1x128xf32>
    %cst_22 = arith.constant 0.000000e+00 : f32
    %40 = vector.broadcast %cst_22 : f32 to vector<1x128xf32>
    %41 = arith.maximumf %39, %40 : vector<1x128xf32>
    %42 = math.absf %39 : vector<1x128xf32>
    %cst_23 = arith.constant 0.000000e+00 : f32
    %43 = vector.broadcast %cst_23 : f32 to vector<1x128xf32>
    %44 = arith.subf %43, %42 : vector<1x128xf32>
    %45 = math.exp %44 : vector<1x128xf32>
    %46 = math.log1p %45 : vector<1x128xf32>
    %47 = arith.addf %41, %46 : vector<1x128xf32>
    %48 = vector.broadcast %14 : f32 to vector<1x128xf32>
    %49 = arith.mulf %47, %48 : vector<1x128xf32>
    %c0_24 = arith.constant 0 : index
    %c0_25 = arith.constant 0 : index
    %50 = vector.load %arg10[%c0_24, %c0_25] : memref<1x128xf32, #tpu.memory_space<vmem>>, vector<1x128xf32>
    tpu.vector_store %arg10[%c0_24, %c0_25], %49 {strides = array<i32>} : memref<1x128xf32, #tpu.memory_space<vmem>>, vector<1x128xf32>,
    %51 = vector.extract_strided_slice %12 {offsets = [4, 0], sizes = [1, 128], strides = [1, 1]} : vector<5x128xf32> to vector<1x128xf32>
    %cst_26 = arith.constant 0.000000e+00 : f32
    %52 = vector.broadcast %cst_26 : f32 to vector<1x128xf32>
    %53 = arith.subf %52, %51 : vector<1x128xf32>
    %54 = math.exp %53 : vector<1x128xf32>
    %cst_27 = arith.constant 1.000000e+00 : f32
    %55 = vector.broadcast %cst_27 : f32 to vector<1x128xf32>
    %56 = arith.addf %55, %54 : vector<1x128xf32>
    %cst_28 = arith.constant 1.000000e+00 : f32
    %57 = vector.broadcast %cst_28 : f32 to vector<1x128xf32>
    %58 = arith.divf %57, %56 : vector<1x128xf32>
    %c0_29 = arith.constant 0 : index
    %c0_30 = arith.constant 0 : index
    %59 = vector.load %arg11[%c0_29, %c0_30] : memref<1x128xf32, #tpu.memory_space<vmem>>, vector<1x128xf32>
    tpu.vector_store %arg11[%c0_29, %c0_30], %58 {strides = array<i32>} : memref<1x128xf32, #tpu.memory_space<vmem>>, vector<1x128xf32>,
    return
  }
  func.func @transform_0(%arg0: i32) -> i32 {
    %c0_i32 = arith.constant 0 : i32
    %c0_i32_0 = arith.constant 0 : i32
    return %c0_i32 : i32
  }
  func.func @transform_1(%arg0: i32) -> (i32, i32) {
    %c0_i32 = arith.constant 0 : i32
    %c0_i32_0 = arith.constant 0 : i32
    return %arg0, %c0_i32 : i32, i32
  }
  func.func @transform_2(%arg0: i32) -> (i32, i32) {
    %c0_i32 = arith.constant 0 : i32
    %c0_i32_0 = arith.constant 0 : i32
    %c0_i32_1 = arith.constant 0 : i32
    return %c0_i32, %c0_i32_0 : i32, i32
  }
  func.func @transform_3(%arg0: i32) -> (i32, i32) {
    %c0_i32 = arith.constant 0 : i32
    %c0_i32_0 = arith.constant 0 : i32
    %c0_i32_1 = arith.constant 0 : i32
    return %c0_i32, %c0_i32_0 : i32, i32
  }
  func.func @transform_4(%arg0: i32) -> (i32, i32) {
    %c0_i32 = arith.constant 0 : i32
    %c0_i32_0 = arith.constant 0 : i32
    %c0_i32_1 = arith.constant 0 : i32
    return %c0_i32, %c0_i32_0 : i32, i32
  }
  func.func @transform_5(%arg0: i32) -> (i32, i32) {
    %c0_i32 = arith.constant 0 : i32
    %c0_i32_0 = arith.constant 0 : i32
    %c0_i32_1 = arith.constant 0 : i32
    return %c0_i32, %c0_i32_0 : i32, i32
  }
  func.func @transform_6(%arg0: i32) -> (i32, i32) {
    %c0_i32 = arith.constant 0 : i32
    %c0_i32_0 = arith.constant 0 : i32
    return %c0_i32, %arg0 : i32, i32
  }
  func.func @transform_7(%arg0: i32) -> (i32, i32) {
    %c0_i32 = arith.constant 0 : i32
    %c0_i32_0 = arith.constant 0 : i32
    return %c0_i32, %arg0 : i32, i32
  }
  func.func @transform_8(%arg0: i32) -> (i32, i32) {
    %c0_i32 = arith.constant 0 : i32
    %c0_i32_0 = arith.constant 0 : i32
    return %c0_i32, %arg0 : i32, i32
  }
  func.func @transform_9(%arg0: i32) -> (i32, i32) {
    %c0_i32 = arith.constant 0 : i32
    %c0_i32_0 = arith.constant 0 : i32
    return %c0_i32, %arg0 : i32, i32
  }
  func.func @transform_10(%arg0: i32) -> (i32, i32) {
    %c0_i32 = arith.constant 0 : i32
    %c0_i32_0 = arith.constant 0 : i32
    return %c0_i32, %arg0 : i32, i32
  }
}

</mosaic_0001>

<llo_original>
// kernel: tpu_custom_call.1
$region0: #{tpu_custom_call.1}
  #allocation0 [shape = 'u32[]', space=smem, size = 0x4, offset = 0x4, fixed_abs, tag = 'smem constant byte address 0x4 - core index']
  #allocation1 [shape = 'u32[72,128]{1,0:T(1,128)}', space=vmem, size = 0x9000, scoped, tag = 'internal scratch']
  %s0 = inlined_call_operand.vmem [shape: f32[2], index: 0, kind: input, shape index: {}]
  %s1 = inlined_call_operand.vmem [shape: f32[8,32], index: 1, kind: input, shape index: {}]
  %s2 = inlined_call_operand.vmem [shape: f32[50,32], index: 2, kind: input, shape index: {}]
  %s3 = inlined_call_operand.vmem [shape: f32[50,1], index: 3, kind: input, shape index: {}]
  %s4 = inlined_call_operand.vmem [shape: f32[5,50], index: 4, kind: input, shape index: {}]
  %s5 = inlined_call_operand.vmem [shape: f32[5,1], index: 5, kind: input, shape index: {}]
  %s6 = inlined_call_operand.hbm [shape: f32[1,8], index: 6, kind: output, shape index: {0}]
  %s7 = inlined_call_operand.hbm [shape: f32[1,8], index: 7, kind: output, shape index: {1}]
  %s8 = inlined_call_operand.hbm [shape: f32[1,8], index: 8, kind: output, shape index: {2}]
  %s9 = inlined_call_operand.hbm [shape: f32[1,8], index: 9, kind: output, shape index: {3}]
  %s10 = inlined_call_operand.hbm [shape: f32[1,8], index: 10, kind: output, shape index: {4}]
  %11 = xla_tuple %s6, %s7, %s8, %s9, %s10
  %s12 = sld [smem:[#allocation0]]
  $region70: #{tpu_custom_call.1} parent=0
    _
  %s14 = ssub.s32 1, %s12
  %s15 = scalar_select 0, %s14, %s12
  $region1: #{tpu_custom_call.1} parent=0
    #allocation2 [shape = 'u8[512]{0}', space=smem, size = 0x200, scoped, tag = 'input window, operand 0, single buffered']
    #allocation3 [shape = 's32[1]{0}', space=sflag, size = 0x4, scoped, tag = 'scoped memory for tpu_custom_call.1']
    #allocation4 [shape = 's32[1]{0}', space=sflag, size = 0x4, scoped, tag = 'scoped memory for tpu_custom_call.1']
    #allocation5 [shape = 'u8[512]{0}', space=vmem, size = 0x400, scoped, tag = 'output window, operand 0, single buffered']
    #allocation6 [shape = 'u8[512]{0}', space=vmem, size = 0x400, scoped, tag = 'output window, operand 1, single buffered']
    #allocation7 [shape = 's32[1]{0}', space=sflag, size = 0x4, scoped, tag = 'scoped memory for tpu_custom_call.1']
    #allocation8 [shape = 'u8[512]{0}', space=vmem, size = 0x400, scoped, tag = 'output window, operand 2, single buffered']
    #allocation9 [shape = 'u8[512]{0}', space=vmem, size = 0x400, scoped, tag = 'output window, operand 3, single buffered']
    #allocation10 [shape = 's32[1]{0}', space=sflag, size = 0x4, scoped, tag = 'scoped memory for tpu_custom_call.1']
    #allocation11 [shape = 'u8[512]{0}', space=vmem, size = 0x400, scoped, tag = 'output window, operand 4, single buffered']
    %16 = vsyncpa [#allocation4], 0
    %17 = vsyncpa [#allocation3], 0
    %18 = vsyncpa [#allocation7], 0
    %19 = vsyncpa [#allocation10], 0
    // Predicated region
    $region2: #{tpu_custom_call.1} parent=1 // pred_check
      _
    $region3: #{tpu_custom_call.1} parent=1 // pred_check_branch
      %21 = sbr.rel (0) target = $region5
    $region4: #{tpu_custom_call.1} parent=1 // pred_region
      %23 = vsyncadd [#allocation4], 0
      %s25 = sshll.u32 %s0, 4
      %s26 = int_to_ptr.vmem [resolvable:$true] %s25
      %28 = dma.vmem_to_smem %s26, 16, [#allocation2], [#allocation4]
    $region5: #{tpu_custom_call.1} parent=1 // pred_fallthru
      _
    // Predicated region
    $region6: #{tpu_custom_call.1} parent=1 // pred_check
      _
    $region7: #{tpu_custom_call.1} parent=1 // pred_check_branch
      %30 = sbr.rel (0) target = $region9
    $region8: #{tpu_custom_call.1} parent=1 // pred_region
      _
    $region9: #{tpu_custom_call.1} parent=1 // pred_fallthru
      _
    // Predicated region
    $region10: #{tpu_custom_call.1} parent=1 // pred_check
      _
    $region11: #{tpu_custom_call.1} parent=1 // pred_check_branch
      %32 = sbr.rel (0) target = $region13
    $region12: #{tpu_custom_call.1} parent=1 // pred_region
      _
    $region13: #{tpu_custom_call.1} parent=1 // pred_fallthru
      _
    // Predicated region
    $region14: #{tpu_custom_call.1} parent=1 // pred_check
      _
    $region15: #{tpu_custom_call.1} parent=1 // pred_check_branch
      %34 = sbr.rel (0) target = $region17
    $region16: #{tpu_custom_call.1} parent=1 // pred_region
      _
    $region17: #{tpu_custom_call.1} parent=1 // pred_fallthru
      _
    // Predicated region
    $region18: #{tpu_custom_call.1} parent=1 // pred_check
      _
    $region19: #{tpu_custom_call.1} parent=1 // pred_check_branch
      %36 = sbr.rel (0) target = $region21
    $region20: #{tpu_custom_call.1} parent=1 // pred_region
      _
    $region21: #{tpu_custom_call.1} parent=1 // pred_fallthru
      _
    // Predicated region
    $region22: #{tpu_custom_call.1} parent=1 // pred_check
      _
    $region23: #{tpu_custom_call.1} parent=1 // pred_check_branch
      %38 = sbr.rel (0) target = $region25
    $region24: #{tpu_custom_call.1} parent=1 // pred_region
      _
    $region25: #{tpu_custom_call.1} parent=1 // pred_fallthru
      _
    // Predicated region
    $region26: #{tpu_custom_call.1} parent=1 // pred_check
      _
    $region27: #{tpu_custom_call.1} parent=1 // pred_check_branch
      %40 = sbr.rel (0) target = $region29
    $region28: #{tpu_custom_call.1} parent=1 // pred_region
      %42 = dma.done [#allocation4], 16
    $region29: #{tpu_custom_call.1} parent=1 // pred_fallthru
      _
    %43 = sfence
    %v44 = vld [vmem:[%s1] sm:$0xff]
    %v45 = vld [vmem:[%s1 + $0x8] sm:$0xff]
    %v46 = vld [vmem:[%s1 + $0x10] sm:$0xff]
    %v47 = vld [vmem:[%s1 + $0x18] sm:$0xff]
    %v48 = vld [vmem:[%s1 + $0x20] sm:$0xff]
    %v49 = vld [vmem:[%s1 + $0x28] sm:$0xff]
    %v50 = vld [vmem:[%s1 + $0x30] sm:$0xff]
    %v51 = vld [vmem:[%s1 + $0x38] sm:$0xff]
    %v52 = vld [vmem:[%s1 + $0x40] sm:$0xff]
    %v53 = vld [vmem:[%s1 + $0x48] sm:$0xff]
    %v54 = vld [vmem:[%s1 + $0x50] sm:$0xff]
    %v55 = vld [vmem:[%s1 + $0x58] sm:$0xff]
    %v56 = vld [vmem:[%s1 + $0x60] sm:$0xff]
    %v57 = vld [vmem:[%s1 + $0x68] sm:$0xff]
    %v58 = vld [vmem:[%s1 + $0x70] sm:$0xff]
    %v59 = vld [vmem:[%s1 + $0x78] sm:$0xff]
    %v60 = vld [vmem:[%s2] sm:$0xff]
    %v61 = vld [vmem:[%s2 + $0x8] sm:$0xff]
    %v62 = vld [vmem:[%s2 + $0x10] sm:$0xff]
    %v63 = vld [vmem:[%s2 + $0x18] sm:$0xff]
    %v64 = vld [vmem:[%s2 + $0x20] sm:$0xff]
    %v65 = vld [vmem:[%s2 + $0x28] sm:$0xff]
    %v66 = vld [vmem:[%s2 + $0x30] sm:$0x3]
    %v67 = vld [vmem:[%s3] sm:$0xff]
    %v68 = vld [vmem:[%s3 + $0x8] sm:$0xff]
    %v69 = vld [vmem:[%s3 + $0x10] sm:$0xff]
    %v70 = vld [vmem:[%s3 + $0x18] sm:$0xff]
    %v71 = vld [vmem:[%s3 + $0x20] sm:$0xff]
    %v72 = vld [vmem:[%s3 + $0x28] sm:$0xff]
    %v73 = vld [vmem:[%s3 + $0x30] sm:$0x3]
    %75 = vset.pattern.permute.xlu0 0
    %76 = vperm.xlu0 %75, %v67
    %v77 = vpop.permute.xlu0 %76
    %80 = vset.pattern.permute.xlu0 0
    %81 = vperm.xlu0 %80, %v68
    %v82 = vpop.permute.xlu0 %81
    %85 = vset.pattern.permute.xlu0 0
    %86 = vperm.xlu0 %85, %v69
    %v87 = vpop.permute.xlu0 %86
    %90 = vset.pattern.permute.xlu0 0
    %91 = vperm.xlu0 %90, %v70
    %v92 = vpop.permute.xlu0 %91
    %95 = vset.pattern.permute.xlu0 0
    %96 = vperm.xlu0 %95, %v71
    %v97 = vpop.permute.xlu0 %96
    %100 = vset.pattern.permute.xlu0 0
    %101 = vperm.xlu0 %100, %v72
    %v102 = vpop.permute.xlu0 %101
    %105 = vset.pattern.permute.xlu0 0
    %106 = vperm.xlu0 %105, %v73
    %v107 = vpop.permute.xlu0 %106
    %vm109 = vcmask 261120
    %v111 = vsel %vm109, %v60, 0
    %v114 = vsel %vm109, %v61, 0
    %v117 = vsel %vm109, %v62, 0
    %v120 = vsel %vm109, %v63, 0
    %v123 = vsel %vm109, %v64, 0
    %v126 = vsel %vm109, %v65, 0
    %v129 = vsel %vm109, %v66, 0
    %v132 = vsel %vm109, %v44, 0
    %v135 = vsel %vm109, %v45, 0
    %v138 = vsel %vm109, %v46, 0
    %v141 = vsel %vm109, %v47, 0
    %v144 = vsel %vm109, %v48, 0
    %v147 = vsel %vm109, %v49, 0
    %v150 = vsel %vm109, %v50, 0
    %v153 = vsel %vm109, %v51, 0
    %v156 = vsel %vm109, %v52, 0
    %v159 = vsel %vm109, %v53, 0
    %v162 = vsel %vm109, %v54, 0
    %v165 = vsel %vm109, %v55, 0
    %v168 = vsel %vm109, %v56, 0
    %v171 = vsel %vm109, %v57, 0
    %v174 = vsel %vm109, %v58, 0
    %v177 = vsel %vm109, %v59, 0
    %179 = vmatpush.xpose.msra.mxu0 %v177
    %180 = vmatpush.xpose.msra.mxu0 %v174
    %181 = vmatpush.xpose.msra.mxu0 %v171
    %182 = vmatpush.xpose.msra.mxu0 %v168
    %183 = vmatpush.xpose.msra.mxu0 %v165
    %184 = vmatpush.xpose.msra.mxu0 %v162
    %185 = vmatpush.xpose.msra.mxu0 %v159
    %186 = vmatpush.xpose.msra.mxu0 %v156
    %187 = vmatpush.xpose.msra.mxu0 %v153
    %188 = vmatpush.xpose.msra.mxu0 %v150
    %189 = vmatpush.xpose.msra.mxu0 %v147
    %190 = vmatpush.xpose.msra.mxu0 %v144
    %191 = vmatpush.xpose.msra.mxu0 %v141
    %192 = vmatpush.xpose.msra.mxu0 %v138
    %193 = vmatpush.xpose.msra.mxu0 %v135
    %194 = vmatpush.xpose.msra.mxu0 %v132
    %195 = vmatmul.f32.gmra.mxu0 %v111
    %v196 = vpop.f32.mrf.mxu0
    %v197 = vadd.f32 %v77, %v196
    %198 = vmatmul.f32.gmra.mxu0 %v114
    %v199 = vpop.f32.mrf.mxu0
    %v200 = vadd.f32 %v82, %v199
    %201 = vmatmul.f32.gmra.mxu0 %v117
    %v202 = vpop.f32.mrf.mxu0
    %v203 = vadd.f32 %v87, %v202
    %204 = vmatmul.f32.gmra.mxu0 %v120
    %v205 = vpop.f32.mrf.mxu0
    %v206 = vadd.f32 %v92, %v205
    %207 = vmatmul.f32.gmra.mxu0 %v123
    %v208 = vpop.f32.mrf.mxu0
    %v209 = vadd.f32 %v97, %v208
    %210 = vmatmul.f32.gmra.mxu0 %v126
    %v211 = vpop.f32.mrf.mxu0
    %v212 = vadd.f32 %v102, %v211
    %213 = vmatmul.f32.gmra.mxu0 %v129
    %v214 = vpop.f32.mrf.mxu0
    %v215 = vadd.f32 %v107, %v214
    %216 = vdwg.mxu0
    %v217 = vmax.f32 %v197, 0.0
    %v218 = vmax.f32 %v200, 0.0
    %v219 = vmax.f32 %v203, 0.0
    %v220 = vmax.f32 %v206, 0.0
    %v221 = vmax.f32 %v209, 0.0
    %v222 = vmax.f32 %v212, 0.0
    %v223 = vmax.f32 %v215, 0.0
    %v224 = vld [vmem:[%s4] sm:$0x1f]
    %v225 = vld [vmem:[%s5] sm:$0x1f]
    %227 = vset.pattern.permute.xlu0 0
    %228 = vperm.xlu0 %227, %v225
    %v229 = vpop.permute.xlu0 %228
    %vm231 = vcmask 408576
    %v233 = vsel %vm231, %v224, 0
    %vm235 = vcmask 1041408
    %v237 = vsel %vm235, %v223, 0
    %239 = vmatpush.msra.mxu0 0.0
    %240 = vmatpush.msra.mxu0 0.0
    %241 = vmatpush.msra.mxu0 0.0
    %242 = vmatpush.msra.mxu0 0.0
    %243 = vmatpush.msra.mxu0 0.0
    %244 = vmatpush.msra.mxu0 0.0
    %245 = vmatpush.msra.mxu0 0.0
    %246 = vmatpush.msra.mxu0 0.0
    %247 = vmatpush.msra.mxu0 0.0
    %248 = vmatpush.msra.mxu0 %v237
    %249 = vmatpush.msra.mxu0 %v222
    %250 = vmatpush.msra.mxu0 %v221
    %251 = vmatpush.msra.mxu0 %v220
    %252 = vmatpush.msra.mxu0 %v219
    %253 = vmatpush.msra.mxu0 %v218
    %254 = vmatpush.msra.mxu0 %v217
    %255 = vmatmul.f32.gmra.mxu0 %v233
    %v256 = vpop.f32.mrf.mxu0
    %v257 = vadd.f32 %v229, %v256
    %258 = vdwg.mxu0
    %s259 = sld [smem:[#allocation2]]
    %s260 = sld [smem:[#allocation2 + $0x1]]
    %261 = vst [vmem:[#allocation5] sm:$0x1] %v257
    %v262 = vmax.f32 %v257, 0.0
    %v263 = vand.u32 2147483647, %v257
    %v264 = vsub.f32 0.0, %v263
    %v265 = vmul.f32 %v264, 1.442695
    %v266 = vpow.pop %v265
    %v267 = vadd.f32 %v266, 1.0
    %v268 = vlog2.pop %v267
    %v269 = vmul.f32 %v268, 0.6931472
    %v270 = vmul.f32 -0.5, %v266
    %v271 = vadd.f32 %v270, 1.0
    %v272 = vmul.f32 %v271, %v266
    %v273 = vand.u32 2147483647, %v266
    %vm274 = vcmp.lt.f32.partialorder %v273, 0.0004427343
    %v275 = vsel %vm274, %v272, %v269
    %v276 = vadd.f32 %v262, %v275
    %277 = vst [vmem:[#allocation6 - $0x1] sm:$0x2] %v276
    %v278 = vstv %s259
    %v279 = vmul.f32 %v276, %v278
    %280 = vst [vmem:[#allocation8 - $0x2] sm:$0x4] %v279
    %v281 = vstv %s260
    %v282 = vmul.f32 %v276, %v281
    %283 = vst [vmem:[#allocation9 - $0x3] sm:$0x8] %v282
    %v284 = vsub.f32 0.0, %v257
    %v285 = vmul.f32 %v284, 1.442695
    %v286 = vpow.pop %v285
    %v287 = vadd.f32 %v286, 1.0
    %v288 = vrcp.pop %v287
    %v289 = vmul.f32 %v287, %v288
    %v290 = vsub.f32 1.0, %v289
    %v291 = vmul.f32 %v288, %v290
    %v292 = vadd.f32 %v288, %v291
    %vm293 = vweird.f32 %v287
    %vm294 = vweird.f32 %v288
    %vm295 = vmor %vm293, %vm294
    %v296 = vsel %vm295, %v288, %v292
    %v297 = vand.u32 2147483647, %v287
    %vm298 = vcmp.eq.f32.partialorder %v297, 8.507059e+37
    %v299 = vand.u32 %v287, 2147483648
    %v300 = vor.u32 1.1754944e-38, %v299
    %v301 = vsel %vm298, %v300, %v296
    %v302 = vmul.f32 1.0, %v301
    %303 = vst [vmem:[#allocation11 - $0x4] sm:$0x10] %v302
    // Predicated region
    $region30: #{tpu_custom_call.1} parent=1 // pred_check
      _
    $region31: #{tpu_custom_call.1} parent=1 // pred_check_branch
      %305 = sbr.rel (0) target = $region33
    $region32: #{tpu_custom_call.1} parent=1 // pred_region
      %307 = vsyncadd [#allocation3], 0
      %s309 = sshll.u32 [#allocation5], 4
      %s310 = int_to_ptr.vmem [resolvable:$true] %s309
      %s311 = sshll.u32 %s6, 4
      %s312 = int_to_ptr.hbm [resolvable:$true] %s311
      %314 = dma.vmem_to_hbm [thread:$0]  %s310, 16, %s312, [#allocation3]
    $region33: #{tpu_custom_call.1} parent=1 // pred_fallthru
      _
    // Predicated region
    $region34: #{tpu_custom_call.1} parent=1 // pred_check
      _
    $region35: #{tpu_custom_call.1} parent=1 // pred_check_branch
      %316 = sbr.rel (0) target = $region37
    $region36: #{tpu_custom_call.1} parent=1 // pred_region
      %318 = vsyncadd [#allocation7], 0
      %s320 = sshll.u32 [#allocation6], 4
      %s321 = int_to_ptr.vmem [resolvable:$true] %s320
      %s322 = sshll.u32 %s7, 4
      %s323 = int_to_ptr.hbm [resolvable:$true] %s322
      %325 = dma.vmem_to_hbm [thread:$0]  %s321, 16, %s323, [#allocation7]
    $region37: #{tpu_custom_call.1} parent=1 // pred_fallthru
      _
    // Predicated region
    $region38: #{tpu_custom_call.1} parent=1 // pred_check
      _
    $region39: #{tpu_custom_call.1} parent=1 // pred_check_branch
      %327 = sbr.rel (0) target = $region41
    $region40: #{tpu_custom_call.1} parent=1 // pred_region
      %329 = vsyncadd [#allocation7], 0
      %s331 = sshll.u32 [#allocation8], 4
      %s332 = int_to_ptr.vmem [resolvable:$true] %s331
      %s333 = sshll.u32 %s8, 4
      %s334 = int_to_ptr.hbm [resolvable:$true] %s333
      %336 = dma.vmem_to_hbm [thread:$0]  %s332, 16, %s334, [#allocation7]
    $region41: #{tpu_custom_call.1} parent=1 // pred_fallthru
      _
    // Predicated region
    $region42: #{tpu_custom_call.1} parent=1 // pred_check
      _
    $region43: #{tpu_custom_call.1} parent=1 // pred_check_branch
      %338 = sbr.rel (0) target = $region45
    $region44: #{tpu_custom_call.1} parent=1 // pred_region
      %340 = vsyncadd [#allocation10], 0
      %s342 = sshll.u32 [#allocation9], 4
      %s343 = int_to_ptr.vmem [resolvable:$true] %s342
      %s344 = sshll.u32 %s9, 4
      %s345 = int_to_ptr.hbm [resolvable:$true] %s344
      %347 = dma.vmem_to_hbm [thread:$0]  %s343, 16, %s345, [#allocation10]
    $region45: #{tpu_custom_call.1} parent=1 // pred_fallthru
      _
    // Predicated region
    $region46: #{tpu_custom_call.1} parent=1 // pred_check
      _
    $region47: #{tpu_custom_call.1} parent=1 // pred_check_branch
      %349 = sbr.rel (0) target = $region49
    $region48: #{tpu_custom_call.1} parent=1 // pred_region
      %351 = vsyncadd [#allocation10], 0
      %s353 = sshll.u32 [#allocation11], 4
      %s354 = int_to_ptr.vmem [resolvable:$true] %s353
      %s355 = sshll.u32 %s10, 4
      %s356 = int_to_ptr.hbm [resolvable:$true] %s355
      %358 = dma.vmem_to_hbm [thread:$0]  %s354, 16, %s356, [#allocation10]
    $region49: #{tpu_custom_call.1} parent=1 // pred_fallthru
      _
    // Predicated region
    $region50: #{tpu_custom_call.1} parent=1 // pred_check
      _
    $region51: #{tpu_custom_call.1} parent=1 // pred_check_branch
      %360 = sbr.rel (0) target = $region53
    $region52: #{tpu_custom_call.1} parent=1 // pred_region
      %362 = dma.done [#allocation3], 16
    $region53: #{tpu_custom_call.1} parent=1 // pred_fallthru
      _
    // Predicated region
    $region54: #{tpu_custom_call.1} parent=1 // pred_check
      _
    $region55: #{tpu_custom_call.1} parent=1 // pred_check_branch
      %364 = sbr.rel (0) target = $region57
    $region56: #{tpu_custom_call.1} parent=1 // pred_region
      %366 = dma.done [#allocation7], 16
    $region57: #{tpu_custom_call.1} parent=1 // pred_fallthru
      _
    // Predicated region
    $region58: #{tpu_custom_call.1} parent=1 // pred_check
      _
    $region59: #{tpu_custom_call.1} parent=1 // pred_check_branch
      %368 = sbr.rel (0) target = $region61
    $region60: #{tpu_custom_call.1} parent=1 // pred_region
      %370 = dma.done [#allocation7], 16
    $region61: #{tpu_custom_call.1} parent=1 // pred_fallthru
      _
    // Predicated region
    $region62: #{tpu_custom_call.1} parent=1 // pred_check
      _
    $region63: #{tpu_custom_call.1} parent=1 // pred_check_branch
      %372 = sbr.rel (0) target = $region65
    $region64: #{tpu_custom_call.1} parent=1 // pred_region
      %374 = dma.done [#allocation10], 16
    $region65: #{tpu_custom_call.1} parent=1 // pred_fallthru
      _
    // Predicated region
    $region66: #{tpu_custom_call.1} parent=1 // pred_check
      _
    $region67: #{tpu_custom_call.1} parent=1 // pred_check_branch
      %376 = sbr.rel (0) target = $region69
    $region68: #{tpu_custom_call.1} parent=1 // pred_region
      %378 = dma.done [#allocation10], 16
    $region69: #{tpu_custom_call.1} parent=1 // pred_fallthru
      _
    %379 = vsyncpa [#allocation3], 1
    %380 = vsyncpa [#allocation7], 1
    %381 = vsyncpa [#allocation10], 1
    %382 = vsyncpa [#allocation4], 1

</llo_original>
